<compile_context>
chip_gen: v7x
topology: tpu7x:2x2x1
jax: 0.10.0
libtpu: 0.0.40
codegen_flags: <defaults>
</compile_context>

<pallas_src>
import jax
import jax.numpy as jnp
from jax.experimental import pallas as pl
from jax.experimental.pallas import tpu as pltpu


def _round_up(v, m):
    return ((v + m - 1) // m) * m


# Working-set target (double-buffered x stream + temps + weights). 32 MiB fits
# comfortably under a 48 MiB scoped-VMEM limit on every generation, including
# v7x's 64 MiB physical VMEM per TensorCore.
_VMEM_BUDGET_BYTES = 32 * 1024 * 1024
_VMEM_LIMIT_BYTES = 48 * 1024 * 1024


def _pick_tile_n(N, L, D, C, requested):
    """Largest N-tile (multiple of 16) that keeps the VMEM footprint in budget."""
    # Per-row bytes: 2 f32 x buffers + in-kernel bf16 x copy + f32 h + bf16 h
    # copy + 2 f32 output buffers.
    per_row = 2 * L * 4 + L * 2 + D * 4 + D * 2 + 2 * C * 4
    # Grid-invariant operands (double-buffered) + slack for compiler temps.
    fixed = 2 * (L * D * 2 + D * 4 + D * C * 2 + C * 4) + (1 << 20)
    max_rows = max(16, (_VMEM_BUDGET_BYTES - fixed) // per_row)
    max_tile = max(16, (max_rows // 16) * 16)
    tile_n = min(_round_up(max(requested, 16), 16), _round_up(N, 16), max_tile)
    return max(16, tile_n)


def attn_net_kernel(x_ref, w1_ref, b1_ref, w2_ref, b2_ref, a_ref):
    # x_ref : (tile_n, L) f32      w1_ref: (L, D) bf16
    # b1_ref: (1, D)      f32      w2_ref: (D, C) bf16
    # b2_ref: (1, C)      f32      a_ref : (tile_n, C) f32
    #
    # Cast x to bf16 on the VPU here (hidden under the x DMA) so the wrapper
    # does not need a separate HBM cast pass.
    x_bf = x_ref[...].astype(jnp.bfloat16)
    # First layer on the MXU (bf16 operands, f32 accumulation); bias+tanh in f32.
    h = jnp.tanh(
        jnp.dot(x_bf, w1_ref[...], preferred_element_type=jnp.float32)
        + b1_ref[...]
    )
    # Second layer also on the (otherwise idle) MXU; tiny C is fine and this
    # keeps the XLU free even at large tiles (v7x) and avoids any lane concat
    # for C > 1.
    a = jnp.dot(
        h.astype(jnp.bfloat16), w2_ref[...], preferred_element_type=jnp.float32
    )
    a_ref[...] = (a + b2_ref[...]).astype(a_ref.dtype)


def attn_net(x, w1, b1, w2, b2, *, tile_n=2048):
    """Returns (A, x) exactly like the PyTorch Attn_Net.forward.

    x: (N, L) f32, w1: (L, D), b1: (1, D), w2: (D, C), b2: (1, C)
    (w1/w2 pre-transposed relative to PyTorch nn.Linear weight layout).
    """
    N, L = x.shape
    D = w1.shape[1]
    C = w2.shape[1]

    tile_n = _pick_tile_n(N, L, D, C, tile_n)

    # x streams as f32 straight from HBM (no wrapper cast/pad pass). Weight /
    # bias casts are tiny, grid-invariant operands.
    x_f32 = x if x.dtype == jnp.float32 else x.astype(jnp.float32)
    w1_b = w1.astype(jnp.bfloat16)
    w2_b = w2.astype(jnp.bfloat16)
    b1_f = b1.astype(jnp.float32).reshape(1, D)
    b2_f = b2.astype(jnp.float32).reshape(1, C)

    a = pl.pallas_call(
        attn_net_kernel,
        out_shape=jax.ShapeDtypeStruct((N, C), jnp.float32),
        grid_spec=pl.GridSpec(
            # Ragged tail handled by Pallas: the last block's input DMA is
            # clamped and the output writeback is clipped to valid rows.
            grid=(pl.cdiv(N, tile_n),),
            in_specs=[
                pl.BlockSpec((tile_n, L), lambda i: (i, 0)),  # x tile (streamed, f32)
                pl.BlockSpec((L, D), lambda i: (0, 0)),       # w1 (grid-invariant)
                pl.BlockSpec((1, D), lambda i: (0, 0)),       # b1
                pl.BlockSpec((D, C), lambda i: (0, 0)),       # w2
                pl.BlockSpec((1, C), lambda i: (0, 0)),       # b2
            ],
            # NOTE: last dim C=1 -> masked stores; accepted knowingly — the A
            # writeback is tile_n*C*4 B/step vs ~tile_n*L*4 B of x read per step.
            out_specs=pl.BlockSpec((tile_n, C), lambda i: (i, 0)),
        ),
        compiler_params=pltpu.CompilerParams(
            # Independent N tiles: shards across both TensorCores on v7x.
            dimension_semantics=("parallel",),
            # Explicit scoped-VMEM limit so the large-tile config is safe on
            # v5e (16 MiB scoped default) yet within v7x's 64 MiB physical VMEM.
            vmem_limit_bytes=_VMEM_LIMIT_BYTES,
        ),
    )(x_f32, w1_b, b1_f, w2_b, b2_f)

    return a, x


if __name__ == "__main__":
    # Small shapes consistent with the module (n_classes=1). N is deliberately
    # NOT a multiple of the tile to exercise the clamped edge-block path.
    N, L, D, C = 200, 256, 128, 1

    key = jax.random.PRNGKey(0)
    k_x, k_w1, k_b1, k_w2, k_b2 = jax.random.split(key, 5)

    x = jax.random.normal(k_x, (N, L), dtype=jnp.float32)
    # Deterministic synthetic parameters (not a checkpoint load).
    w1 = jax.random.normal(k_w1, (L, D), dtype=jnp.float32) * 0.02
    b1 = jax.random.normal(k_b1, (1, D), dtype=jnp.float32) * 0.02
    w2 = jax.random.normal(k_w2, (D, C), dtype=jnp.float32) * 0.02
    b2 = jax.random.normal(k_b2, (1, C), dtype=jnp.float32) * 0.02

    # Multi-step grid with a ragged (72-row) last block.
    a_out, x_out = attn_net(x, w1, b1, w2, b2, tile_n=128)
    a_out = jax.block_until_ready(a_out)
    x_out = jax.block_until_ready(x_out)

    # Default large-tile path (clamps to a single block for this small N).
    a_out_big, _ = attn_net(x, w1, b1, w2, b2)
    a_out_big = jax.block_until_ready(a_out_big)

    # Matched-precision reference (same bf16 MXU operands, f32 accumulation).
    h_ref = jnp.tanh(
        jnp.dot(
            x.astype(jnp.bfloat16),
            w1.astype(jnp.bfloat16),
            preferred_element_type=jnp.float32,
        )
        + b1
    )
    a_ref_matched = (
        jnp.dot(
            h_ref.astype(jnp.bfloat16),
            w2.astype(jnp.bfloat16),
            preferred_element_type=jnp.float32,
        )
        + b2
    )
    # Pure f32 reference (loose tolerance: MXU operands are bf16).
    a_ref_f32 = jnp.tanh(x @ w1 + b1) @ w2 + b2

    assert a_out.shape == (N, C)
    assert x_out.shape == (N, L)
    assert jnp.allclose(a_out, a_ref_matched, atol=2e-3, rtol=2e-3), "matched ref mismatch"
    assert jnp.allclose(a_out, a_ref_f32, atol=2e-2, rtol=2e-2), "f32 reference mismatch"
    assert jnp.allclose(a_out_big, a_out, atol=2e-3, rtol=2e-3), "tile-size dependence"
    assert jnp.array_equal(x_out, x)

    print("KERNEL_OK")
</pallas_src>

<mosaic_0001>
module attributes {stable_mosaic.version = 11 : i64} {
  func.func @attn_net_kernel(%arg0: i32, %arg1: memref<128x256xf32, #tpu.memory_space<vmem>>, %arg2: memref<256x128xbf16, #tpu.memory_space<vmem>>, %arg3: memref<1x128xf32, #tpu.memory_space<vmem>>, %arg4: memref<128x1xbf16, #tpu.memory_space<vmem>>, %arg5: memref<1x1xf32, #tpu.memory_space<vmem>>, %arg6: memref<128x1xf32, #tpu.memory_space<vmem>>) attributes {dimension_semantics = [#tpu.dimension_semantics<parallel>], iteration_bounds = array<i64: 2>, scalar_prefetch = 0 : i64, scratch_operands = 0 : i64, tpu.core_type = #tpu.core_type<tc>, window_params = [{transform_indices = @transform_0, window_bounds = array<i64: 128, 256>}, {pipeline_mode = #tpu.pipeline_mode<synchronous>, transform_indices = @transform_1, window_bounds = array<i64: 256, 128>}, {pipeline_mode = #tpu.pipeline_mode<synchronous>, transform_indices = @transform_2, window_bounds = array<i64: 1, 128>}, {pipeline_mode = #tpu.pipeline_mode<synchronous>, transform_indices = @transform_3, window_bounds = array<i64: 128, 1>}, {pipeline_mode = #tpu.pipeline_mode<synchronous>, transform_indices = @transform_4, window_bounds = array<i64: 1, 1>}, {transform_indices = @transform_5, window_bounds = array<i64: 128, 1>}]} {
    %c0 = arith.constant 0 : index
    %c0_0 = arith.constant 0 : index
    %0 = vector.load %arg1[%c0, %c0_0] : memref<128x256xf32, #tpu.memory_space<vmem>>, vector<128x256xf32>
    %1 = arith.truncf %0 : vector<128x256xf32> to vector<128x256xbf16>
    %c0_1 = arith.constant 0 : index
    %c0_2 = arith.constant 0 : index
    %2 = vector.load %arg2[%c0_1, %c0_2] : memref<256x128xbf16, #tpu.memory_space<vmem>>, vector<256x128xbf16>
    %cst = arith.constant dense<0.000000e+00> : vector<128x128xf32>
    %3 = tpu.matmul %1, %2, %cst {dimension_numbers = #tpu.dot_dimension_numbers<[1], [0], [0], [1], [0, 0, 1, 1], [], []>} : vector<128x256xbf16>, vector<256x128xbf16>, vector<128x128xf32> -> vector<128x128xf32>
    %c0_3 = arith.constant 0 : index
    %c0_4 = arith.constant 0 : index
    %4 = vector.load %arg3[%c0_3, %c0_4] : memref<1x128xf32, #tpu.memory_space<vmem>>, vector<1x128xf32>
    %5 = vector.broadcast %4 : vector<1x128xf32> to vector<128x128xf32>
    %6 = arith.addf %3, %5 : vector<128x128xf32>
    %7 = math.tanh %6 : vector<128x128xf32>
    %8 = arith.truncf %7 : vector<128x128xf32> to vector<128x128xbf16>
    %c0_5 = arith.constant 0 : index
    %c0_6 = arith.constant 0 : index
    %9 = vector.load %arg4[%c0_5, %c0_6] : memref<128x1xbf16, #tpu.memory_space<vmem>>, vector<128x1xbf16>
    %cst_7 = arith.constant dense<0.000000e+00> : vector<128x1xf32>
    %10 = tpu.matmul %8, %9, %cst_7 {dimension_numbers = #tpu.dot_dimension_numbers<[1], [0], [0], [1], [0, 0, 1, 1], [], []>} : vector<128x128xbf16>, vector<128x1xbf16>, vector<128x1xf32> -> vector<128x1xf32>
    %c0_8 = arith.constant 0 : index
    %c0_9 = arith.constant 0 : index
    %11 = vector.load %arg5[%c0_8, %c0_9] : memref<1x1xf32, #tpu.memory_space<vmem>>, vector<1x1xf32>
    %12 = vector.broadcast %11 : vector<1x1xf32> to vector<128x1xf32>
    %13 = arith.addf %10, %12 : vector<128x1xf32>
    %c0_10 = arith.constant 0 : index
    %c0_11 = arith.constant 0 : index
    %14 = vector.load %arg6[%c0_10, %c0_11] : memref<128x1xf32, #tpu.memory_space<vmem>>, vector<128x1xf32>
    tpu.vector_store %arg6[%c0_10, %c0_11], %13 {strides = array<i32>} : memref<128x1xf32, #tpu.memory_space<vmem>>, vector<128x1xf32>,
    return
  }
  func.func @transform_0(%arg0: i32) -> (i32, i32) {
    %c0_i32 = arith.constant 0 : i32
    %c0_i32_0 = arith.constant 0 : i32
    return %arg0, %c0_i32 : i32, i32
  }
  func.func @transform_1(%arg0: i32) -> (i32, i32) {
    %c0_i32 = arith.constant 0 : i32
    %c0_i32_0 = arith.constant 0 : i32
    %c0_i32_1 = arith.constant 0 : i32
    return %c0_i32, %c0_i32_0 : i32, i32
  }
  func.func @transform_2(%arg0: i32) -> (i32, i32) {
    %c0_i32 = arith.constant 0 : i32
    %c0_i32_0 = arith.constant 0 : i32
    %c0_i32_1 = arith.constant 0 : i32
    return %c0_i32, %c0_i32_0 : i32, i32
  }
  func.func @transform_3(%arg0: i32) -> (i32, i32) {
    %c0_i32 = arith.constant 0 : i32
    %c0_i32_0 = arith.constant 0 : i32
    %c0_i32_1 = arith.constant 0 : i32
    return %c0_i32, %c0_i32_0 : i32, i32
  }
  func.func @transform_4(%arg0: i32) -> (i32, i32) {
    %c0_i32 = arith.constant 0 : i32
    %c0_i32_0 = arith.constant 0 : i32
    %c0_i32_1 = arith.constant 0 : i32
    return %c0_i32, %c0_i32_0 : i32, i32
  }
  func.func @transform_5(%arg0: i32) -> (i32, i32) {
    %c0_i32 = arith.constant 0 : i32
    %c0_i32_0 = arith.constant 0 : i32
    return %arg0, %c0_i32 : i32, i32
  }
}

</mosaic_0001>

<llo_original>
// kernel: tpu_custom_call.1
$region0: #{tpu_custom_call.1}
  #allocation0 [shape = 'u32[]', space=smem, size = 0x4, offset = 0x4, fixed_abs, tag = 'smem constant byte address 0x4 - core index']
  #allocation1 [shape = 'u32[144,128]{1,0:T(1,128)}', space=vmem, size = 0x12000, scoped, tag = 'internal scratch']
  #allocation2 [shape = 'f32[1,1]{1,0:T(1,128)S(1)}', space=vmem, size = 0x200, scoped, tag = 'scoped memory for tpu_custom_call.1']
  %s0 = inlined_call_operand.hbm [shape: f32[200,256], index: 0, kind: input, shape index: {}]
  %s1 = inlined_call_operand.hbm [shape: bf16[256,128], index: 1, kind: input, shape index: {}]
  %s2 = inlined_call_operand.vmem [shape: f32[1,128], index: 2, kind: input, shape index: {}]
  %s3 = inlined_call_operand.vmem [shape: bf16[128,1], index: 3, kind: input, shape index: {}]
  %s4 = inlined_call_operand.<no memory space> [shape: f32[1,1], index: 4, kind: input, shape index: {}]
  %s5 = inlined_call_operand.vmem [shape: f32[200,1], index: 5, kind: output, shape index: {}]
  %s6 = sld [smem:[#allocation0]]
  $region109: #{tpu_custom_call.1} parent=0
    _
  %s8 = ssub.s32 1, %s6
  %s9 = scalar_select 0, %s8, %s6
  %v10 = vstv %s4
  %11 = vst [vmem:[#allocation2] sm:$0x1] %v10
  $region1: #{tpu_custom_call.1} parent=0
    #allocation3 [shape = 'u8[262144]{0}', space=vmem, size = 0x40000, scoped, tag = 'input window, operand 0']
    #allocation4 [shape = 's32[2]{0}', space=sflag, size = 0x8, scoped, tag = 'scoped memory for tpu_custom_call.1']
    #allocation5 [shape = 'u8[65536]{0}', space=vmem, size = 0x10000, scoped, tag = 'input window, operand 1, single buffered']
    #allocation6 [shape = 's32[1]{0}', space=sflag, size = 0x4, scoped, tag = 'scoped memory for tpu_custom_call.1']
    #allocation7 [shape = 'u8[131072]{0}', space=vmem, size = 0x20000, scoped, tag = 'output window, operand 0']
    %12 = vsyncpa [#allocation4], 0
    %s13 = scalar_lea.sflag [#allocation4], 1
    %14 = vsyncpa %s13, 0
    %15 = vsyncpa [#allocation6], 0
    loop: start=0, step=1, limit=4
    $region2: #{tpu_custom_call.1} parent=1 // loop_pre_header
      _
    $region3: #{tpu_custom_call.1} parent=1 // loop_header
      %s17 = sphi 0, %s21
      %p18 = scmp.ge.s32.totalorder %s17, 4
      %s27 = sphi 0, %s29
      %s30 = sphi 0, %s27
      %s31 = sphi 0, %s30
      %s47 = sphi 0, %s31
      %s51 = sphi 0, %s51
      %s53 = sphi 0, %s51
      %s54 = sphi 0, %s53
      %s68 = sphi 0, %s54
      %s72 = sphi 0, %s72
      %s74 = sphi 0, %s72
      %s75 = sphi 0, %s74
      %s89 = sphi 0, %s75
      %s93 = sphi 0, %s93
      %s95 = sphi 0, %s93
      %s96 = sphi 0, %s95
      %s110 = sphi 0, %s96
      %s114 = sphi 0, %s114
      %s116 = sphi 0, %s114
      %s117 = sphi 0, %s116
      %s131 = sphi 0, %s117
      %s137 = sphi 0, %s139
      %s140 = sphi 0, %s137
      %s141 = sphi 0, %s140
      %s157 = sphi 0, %s141
    $region4: #{tpu_custom_call.1} parent=1 // loop_header_branch
      %20 = sbr.rel (%p18) target = $region8
    $region5: #{tpu_custom_call.1} parent=1 // loop_body
      %s22 = ssub.s32 %s17, 1
      %s23 = ssub.s32 %s17, 2
      %s24 = sadd.s32 %s17, 1
      %s25 = ssub.s32 %s17, %s24
      %p26 = scmp.eq.s32.totalorder %s25, 0
      %s28 = sadd.s32 %s27, 1
      %s29 = scalar_select %p26, %s27, %s28
      %p32 = pneg %p26
      %p33 = scmp.eq.s32.totalorder %s17, 1
      %p34 = por %p32, %p33
      %p35 = scmp.ne.s32.totalorder %s27, %s30
      %p36 = scmp.eq.s32.totalorder %s17, 0
      %p37 = por %p35, %p36
      %p38 = scmp.ne.s32.totalorder %s27, %s30
      %p39 = scmp.eq.s32.totalorder %s22, 1
      %p40 = por %p38, %p39
      %p41 = scmp.ne.s32.totalorder %s30, %s31
      %p42 = scmp.eq.s32.totalorder %s22, 0
      %p43 = por %p41, %p42
      %p44 = scmp.ne.s32.totalorder %s30, %s31
      %p45 = scmp.eq.s32.totalorder %s23, 1
      %p46 = por %p44, %p45
      %p48 = scmp.ne.s32.totalorder %s31, %s47
      %p49 = scmp.eq.s32.totalorder %s23, 0
      %p50 = por %p48, %p49
      %s52 = sadd.s32 %s51, 1
      %p55 = scmp.eq.s32.totalorder %s17, 1
      %p56 = scmp.ne.s32.totalorder %s51, %s53
      %p57 = scmp.eq.s32.totalorder %s17, 0
      %p58 = por %p56, %p57
      %p59 = scmp.ne.s32.totalorder %s51, %s53
      %p60 = scmp.eq.s32.totalorder %s22, 1
      %p61 = por %p59, %p60
      %p62 = scmp.ne.s32.totalorder %s53, %s54
      %p63 = scmp.eq.s32.totalorder %s22, 0
      %p64 = por %p62, %p63
      %p65 = scmp.ne.s32.totalorder %s53, %s54
      %p66 = scmp.eq.s32.totalorder %s23, 1
      %p67 = por %p65, %p66
      %p69 = scmp.ne.s32.totalorder %s54, %s68
      %p70 = scmp.eq.s32.totalorder %s23, 0
      %p71 = por %p69, %p70
      %s73 = sadd.s32 %s72, 1
      %p76 = scmp.eq.s32.totalorder %s17, 1
      %p77 = scmp.ne.s32.totalorder %s72, %s74
      %p78 = scmp.eq.s32.totalorder %s17, 0
      %p79 = por %p77, %p78
      %p80 = scmp.ne.s32.totalorder %s72, %s74
      %p81 = scmp.eq.s32.totalorder %s22, 1
      %p82 = por %p80, %p81
      %p83 = scmp.ne.s32.totalorder %s74, %s75
      %p84 = scmp.eq.s32.totalorder %s22, 0
      %p85 = por %p83, %p84
      %p86 = scmp.ne.s32.totalorder %s74, %s75
      %p87 = scmp.eq.s32.totalorder %s23, 1
      %p88 = por %p86, %p87
      %p90 = scmp.ne.s32.totalorder %s75, %s89
      %p91 = scmp.eq.s32.totalorder %s23, 0
      %p92 = por %p90, %p91
      %s94 = sadd.s32 %s93, 1
      %p97 = scmp.eq.s32.totalorder %s17, 1
      %p98 = scmp.ne.s32.totalorder %s93, %s95
      %p99 = scmp.eq.s32.totalorder %s17, 0
      %p100 = por %p98, %p99
      %p101 = scmp.ne.s32.totalorder %s93, %s95
      %p102 = scmp.eq.s32.totalorder %s22, 1
      %p103 = por %p101, %p102
      %p104 = scmp.ne.s32.totalorder %s95, %s96
      %p105 = scmp.eq.s32.totalorder %s22, 0
      %p106 = por %p104, %p105
      %p107 = scmp.ne.s32.totalorder %s95, %s96
      %p108 = scmp.eq.s32.totalorder %s23, 1
      %p109 = por %p107, %p108
      %p111 = scmp.ne.s32.totalorder %s96, %s110
      %p112 = scmp.eq.s32.totalorder %s23, 0
      %p113 = por %p111, %p112
      %s115 = sadd.s32 %s114, 1
      %p118 = scmp.eq.s32.totalorder %s17, 1
      %p119 = scmp.ne.s32.totalorder %s114, %s116
      %p120 = scmp.eq.s32.totalorder %s17, 0
      %p121 = por %p119, %p120
      %p122 = scmp.ne.s32.totalorder %s114, %s116
      %p123 = scmp.eq.s32.totalorder %s22, 1
      %p124 = por %p122, %p123
      %p125 = scmp.ne.s32.totalorder %s116, %s117
      %p126 = scmp.eq.s32.totalorder %s22, 0
      %p127 = por %p125, %p126
      %p128 = scmp.ne.s32.totalorder %s116, %s117
      %p129 = scmp.eq.s32.totalorder %s23, 1
      %p130 = por %p128, %p129
      %p132 = scmp.ne.s32.totalorder %s117, %s131
      %p133 = scmp.eq.s32.totalorder %s23, 0
      %p134 = por %p132, %p133
      %s135 = ssub.s32 %s17, %s24
      %p136 = scmp.eq.s32.totalorder %s135, 0
      %s138 = sadd.s32 %s137, 1
      %s139 = scalar_select %p136, %s137, %s138
      %p142 = pneg %p136
      %p143 = scmp.eq.s32.totalorder %s17, 1
      %p144 = por %p142, %p143
      %p145 = scmp.ne.s32.totalorder %s137, %s140
      %p146 = scmp.eq.s32.totalorder %s17, 0
      %p147 = por %p145, %p146
      %p148 = scmp.ne.s32.totalorder %s137, %s140
      %p149 = scmp.eq.s32.totalorder %s22, 1
      %p150 = por %p148, %p149
      %p151 = scmp.ne.s32.totalorder %s140, %s141
      %p152 = scmp.eq.s32.totalorder %s22, 0
      %p153 = por %p151, %p152
      %p154 = scmp.ne.s32.totalorder %s140, %s141
      %p155 = scmp.eq.s32.totalorder %s23, 1
      %p156 = por %p154, %p155
      %p158 = scmp.ne.s32.totalorder %s141, %s157
      %p159 = scmp.eq.s32.totalorder %s23, 0
      %p160 = por %p158, %p159
      %p161 = scmp.le.s32.totalorder 1, %s17
      %p162 = scmp.lt.s32.totalorder %s17, 3
      %p163 = pnand %p161, %p162
      %p164 = pneg %p163
      // Predicated region
      $region9: #{tpu_custom_call.1} parent=5 // pred_check
        _
      $region10: #{tpu_custom_call.1} parent=5 // pred_check_branch
        %166 = sbr.rel (%p163) target = $region12
      $region11: #{tpu_custom_call.1} parent=5 // pred_region
        %s167 = ssub.s32 %s17, 1
        // Predicated region
        $region13: #{tpu_custom_call.1} parent=11 // pred_check
          %p168 = pneg %p64
        $region14: #{tpu_custom_call.1} parent=11 // pred_check_branch
          %170 = sbr.rel (%p168) target = $region16
        $region15: #{tpu_custom_call.1} parent=11 // pred_region
          %s172 = ssub.s32 2048, 2048
          %173 = vsyncadd [#allocation6], %s172
          %s174 = sshll.u32 [#allocation5], 4
          %s175 = int_to_ptr.vmem [resolvable:$true] %s174
          %180 = dma.hbm_to_vmem [thread:$0]  %s1, 2048, %s175, [#allocation6], 64, 64, 4
        $region16: #{tpu_custom_call.1} parent=11 // pred_fallthru
          _
        // Predicated region
        $region17: #{tpu_custom_call.1} parent=11 // pred_check
          %p181 = pneg %p85
        $region18: #{tpu_custom_call.1} parent=11 // pred_check_branch
          %183 = sbr.rel (%p181) target = $region20
        $region19: #{tpu_custom_call.1} parent=11 // pred_region
          _
        $region20: #{tpu_custom_call.1} parent=11 // pred_fallthru
          _
        // Predicated region
        $region21: #{tpu_custom_call.1} parent=11 // pred_check
          %p184 = pneg %p106
        $region22: #{tpu_custom_call.1} parent=11 // pred_check_branch
          %186 = sbr.rel (%p184) target = $region24
        $region23: #{tpu_custom_call.1} parent=11 // pred_region
          _
        $region24: #{tpu_custom_call.1} parent=11 // pred_fallthru
          _
        // Predicated region
        $region25: #{tpu_custom_call.1} parent=11 // pred_check
          %p187 = pneg %p127
        $region26: #{tpu_custom_call.1} parent=11 // pred_check_branch
          %189 = sbr.rel (%p187) target = $region28
        $region27: #{tpu_custom_call.1} parent=11 // pred_region
          _
        $region28: #{tpu_custom_call.1} parent=11 // pred_fallthru
          _
      $region12: #{tpu_custom_call.1} parent=5 // pred_fallthru
        _
      %p190 = scmp.lt.s32.totalorder %s17, 2
      // Predicated region
      $region29: #{tpu_custom_call.1} parent=5 // pred_check
        %p191 = pneg %p190
      $region30: #{tpu_custom_call.1} parent=5 // pred_check_branch
        %193 = sbr.rel (%p191) target = $region32
      $region31: #{tpu_custom_call.1} parent=5 // pred_region
        // Predicated region
        $region33: #{tpu_custom_call.1} parent=31 // pred_check
          %p194 = pneg %p37
        $region34: #{tpu_custom_call.1} parent=31 // pred_check_branch
          %196 = sbr.rel (%p194) target = $region36
        $region35: #{tpu_custom_call.1} parent=31 // pred_region
          %s197 = sand.u32 %s27, 1
          %s198 = scalar_lea.sflag [#allocation4], %s197
          %s199 = sand.u32 %s27, 1
          %s200 = smul.addr %s199, 256
          %s201 = scalar_lea.vmem [#allocation3], %s200
          %s202 = smul.u32 16, %s17
          %s203 = ssub.s32 25, %s202
          %p204 = scmp.lt.s32.totalorder %s203, 16
          %s205 = scalar_select %p204, %s203, 16
          %s206 = smul.u32 128, %s205
          %s207 = smul.u32 %s206, 2
          %s209 = ssub.s32 4096, %s207
          %210 = vsyncadd %s198, %s209
          %p211 = scmp.ne.s32.totalorder 0, %s207
          %s212 = smul.addr %s202, 2
          %s213 = smul.addr %s212, 128
          %s214 = scalar_lea.hbm %s0, %s213
          %s215 = smul.u32 16, %s205
          %s216 = sshll.u32 %s201, 4
          %s217 = int_to_ptr.vmem [resolvable:$true] %s216
          %s218 = sshll.u32 %s215, 4
          %222 = dma.hbm_to_vmem [thread:$0]  (%p211), %s214, %s218, %s217, %s198, 256, 256, 16
        $region36: #{tpu_custom_call.1} parent=31 // pred_fallthru
          _
      $region32: #{tpu_custom_call.1} parent=5 // pred_fallthru
        _
      %p223 = scmp.le.s32.totalorder 1, %s17
      %p224 = scmp.lt.s32.totalorder %s17, 3
      %p225 = pnand %p223, %p224
      %p226 = pneg %p225
      // Predicated region
      $region37: #{tpu_custom_call.1} parent=5 // pred_check
        _
      $region38: #{tpu_custom_call.1} parent=5 // pred_check_branch
        %228 = sbr.rel (%p225) target = $region40
      $region39: #{tpu_custom_call.1} parent=5 // pred_region
        %s229 = ssub.s32 %s17, 1
        %s230 = sand.u32 %s30, 1
        %s231 = scalar_lea.sflag [#allocation4], %s230
        %s232 = sand.u32 %s30, 1
        %s233 = smul.addr %s232, 256
        %s234 = scalar_lea.vmem [#allocation3], %s233
        // Predicated region
        $region41: #{tpu_custom_call.1} parent=39 // pred_check
          %p235 = pneg %p43
        $region42: #{tpu_custom_call.1} parent=39 // pred_check_branch
          %237 = sbr.rel (%p235) target = $region44
        $region43: #{tpu_custom_call.1} parent=39 // pred_region
          %238 = dma.done %s231, 4096
        $region44: #{tpu_custom_call.1} parent=39 // pred_fallthru
          _
        // Predicated region
        $region45: #{tpu_custom_call.1} parent=39 // pred_check
          %p239 = pneg %p64
        $region46: #{tpu_custom_call.1} parent=39 // pred_check_branch
          %241 = sbr.rel (%p239) target = $region48
        $region47: #{tpu_custom_call.1} parent=39 // pred_region
          %242 = dma.done [#allocation6], 2048
        $region48: #{tpu_custom_call.1} parent=39 // pred_fallthru
          _
        %s243 = sand.u32 %s30, 1
        %s244 = scalar_lea.sflag [#allocation4], %s243
        %s245 = sand.u32 %s30, 1
        %s246 = smul.addr %s245, 256
        %s247 = scalar_lea.vmem [#allocation3], %s246
        %p248 = pneg %p43
        %p249 = pneg %p40
        %p250 = pneg %p64
        %p251 = pneg %p61
        %p252 = pneg %p85
        %p253 = pneg %p82
        %p254 = pneg %p106
        %p255 = pneg %p103
        %p256 = pneg %p127
        %p257 = pneg %p124
        %p258 = pneg %p153
        %p259 = pneg %p150
        %s260 = sand.u32 %s140, 1
        %s261 = sand.u32 %s140, 1
        %s262 = smul.addr %s261, 128
        %s263 = scalar_lea.vmem [#allocation7], %s262
        %s264 = smul.u32 16, %s22
        %s265 = ssub.s32 25, %s264
        %p266 = scmp.lt.s32.totalorder %s265, 16
        %s267 = scalar_select %p266, %s265, 16
        %s268 = smul.u32 128, %s267
        %s269 = smul.u32 %s268, 2
        %s270 = smul.u32 16, %s22
        %s271 = ssub.s32 25, %s270
        %p272 = scmp.lt.s32.totalorder %s271, 16
        %s273 = scalar_select %p272, %s271, 16
        %s274 = smul.u32 128, %s273
        %v276 = vld [vmem:[%s234] sm:$0xff]
        %v277 = vld [vmem:[%s234 + $0x8] sm:$0xff]
        %v278 = vld [vmem:[%s234 + $0x10] sm:$0xff]
        %v279 = vld [vmem:[%s234 + $0x18] sm:$0xff]
        %v280 = vld [vmem:[%s234 + $0x20] sm:$0xff]
        %v281 = vld [vmem:[%s234 + $0x28] sm:$0xff]
        %v282 = vld [vmem:[%s234 + $0x30] sm:$0xff]
        %v283 = vld [vmem:[%s234 + $0x38] sm:$0xff]
        %v284 = vld [vmem:[%s234 + $0x40] sm:$0xff]
        %v285 = vld [vmem:[%s234 + $0x48] sm:$0xff]
        %v286 = vld [vmem:[%s234 + $0x50] sm:$0xff]
        %v287 = vld [vmem:[%s234 + $0x58] sm:$0xff]
        %v288 = vld [vmem:[%s234 + $0x60] sm:$0xff]
        %v289 = vld [vmem:[%s234 + $0x68] sm:$0xff]
        %v290 = vld [vmem:[%s234 + $0x70] sm:$0xff]
        %v291 = vld [vmem:[%s234 + $0x78] sm:$0xff]
        %v292 = vld [vmem:[%s234 + $0x80] sm:$0xff]
        %v293 = vld [vmem:[%s234 + $0x88] sm:$0xff]
        %v294 = vld [vmem:[%s234 + $0x90] sm:$0xff]
        %v295 = vld [vmem:[%s234 + $0x98] sm:$0xff]
        %v296 = vld [vmem:[%s234 + $0xa0] sm:$0xff]
        %v297 = vld [vmem:[%s234 + $0xa8] sm:$0xff]
        %v298 = vld [vmem:[%s234 + $0xb0] sm:$0xff]
        %v299 = vld [vmem:[%s234 + $0xb8] sm:$0xff]
        %v300 = vld [vmem:[%s234 + $0xc0] sm:$0xff]
        %v301 = vld [vmem:[%s234 + $0xc8] sm:$0xff]
        %v302 = vld [vmem:[%s234 + $0xd0] sm:$0xff]
        %v303 = vld [vmem:[%s234 + $0xd8] sm:$0xff]
        %v304 = vld [vmem:[%s234 + $0xe0] sm:$0xff]
        %v305 = vld [vmem:[%s234 + $0xe8] sm:$0xff]
        %v306 = vld [vmem:[%s234 + $0xf0] sm:$0xff]
        %v307 = vld [vmem:[%s234 + $0xf8] sm:$0xff]
        %v308 = vpack.c.bf16 %v278, %v276
        %v309 = vpack.c.bf16 %v279, %v277
        %v310 = vpack.c.bf16 %v282, %v280
        %v311 = vpack.c.bf16 %v283, %v281
        %v312 = vpack.c.bf16 %v286, %v284
        %v313 = vpack.c.bf16 %v287, %v285
        %v314 = vpack.c.bf16 %v290, %v288
        %v315 = vpack.c.bf16 %v291, %v289
        %v316 = vpack.c.bf16 %v294, %v292
        %v317 = vpack.c.bf16 %v295, %v293
        %v318 = vpack.c.bf16 %v298, %v296
        %v319 = vpack.c.bf16 %v299, %v297
        %v320 = vpack.c.bf16 %v302, %v300
        %v321 = vpack.c.bf16 %v303, %v301
        %v322 = vpack.c.bf16 %v306, %v304
        %v323 = vpack.c.bf16 %v307, %v305
        %v324 = vld [vmem:[#allocation5] sm:$0xf]
        %v325 = vld [vmem:[#allocation5 + $0x4] sm:$0xf]
        %v326 = vld [vmem:[#allocation5 + $0x8] sm:$0xf]
        %v327 = vld [vmem:[#allocation5 + $0xc] sm:$0xf]
        %v328 = vld [vmem:[#allocation5 + $0x10] sm:$0xf]
        %v329 = vld [vmem:[#allocation5 + $0x14] sm:$0xf]
        %v330 = vld [vmem:[#allocation5 + $0x18] sm:$0xf]
        %v331 = vld [vmem:[#allocation5 + $0x1c] sm:$0xf]
        %v332 = vld [vmem:[#allocation5 + $0x20] sm:$0xf]
        %v333 = vld [vmem:[#allocation5 + $0x24] sm:$0xf]
        %v334 = vld [vmem:[#allocation5 + $0x28] sm:$0xf]
        %v335 = vld [vmem:[#allocation5 + $0x2c] sm:$0xf]
        %v336 = vld [vmem:[#allocation5 + $0x30] sm:$0xf]
        %v337 = vld [vmem:[#allocation5 + $0x34] sm:$0xf]
        %v338 = vld [vmem:[#allocation5 + $0x38] sm:$0xf]
        %v339 = vld [vmem:[#allocation5 + $0x3c] sm:$0xf]
        %v340 = vld [vmem:[#allocation5 + $0x40] sm:$0xf]
        %v341 = vld [vmem:[#allocation5 + $0x44] sm:$0xf]
        %v342 = vld [vmem:[#allocation5 + $0x48] sm:$0xf]
        %v343 = vld [vmem:[#allocation5 + $0x4c] sm:$0xf]
        %v344 = vld [vmem:[#allocation5 + $0x50] sm:$0xf]
        %v345 = vld [vmem:[#allocation5 + $0x54] sm:$0xf]
        %v346 = vld [vmem:[#allocation5 + $0x58] sm:$0xf]
        %v347 = vld [vmem:[#allocation5 + $0x5c] sm:$0xf]
        %v348 = vld [vmem:[#allocation5 + $0x60] sm:$0xf]
        %v349 = vld [vmem:[#allocation5 + $0x64] sm:$0xf]
        %v350 = vld [vmem:[#allocation5 + $0x68] sm:$0xf]
        %v351 = vld [vmem:[#allocation5 + $0x6c] sm:$0xf]
        %v352 = vld [vmem:[#allocation5 + $0x70] sm:$0xf]
        %v353 = vld [vmem:[#allocation5 + $0x74] sm:$0xf]
        %v354 = vld [vmem:[#allocation5 + $0x78] sm:$0xf]
        %v355 = vld [vmem:[#allocation5 + $0x7c] sm:$0xf]
        %v356 = vld [vmem:[%s2] sm:$0x1]
        %v358 = vlaneseq
        %v359 = vshrl.u32 %v358, 7
        %v360 = vsub.s32 0, %v359
        %v361 = vrot.slane %v356, %v360
        %v395 = vunpack.c.l.b16 %v324
        %v396 = vunpack.c.l.b16 %v325
        %v397 = vunpack.c.l.b16 %v326
        %v398 = vunpack.c.l.b16 %v327
        %v399 = vunpack.c.l.b16 %v328
        %v400 = vunpack.c.l.b16 %v329
        %v401 = vunpack.c.l.b16 %v330
        %v402 = vunpack.c.l.b16 %v331
        %v403 = vunpack.c.l.b16 %v332
        %v404 = vunpack.c.l.b16 %v333
        %v405 = vunpack.c.l.b16 %v334
        %v406 = vunpack.c.l.b16 %v335
        %v407 = vunpack.c.l.b16 %v336
        %v408 = vunpack.c.l.b16 %v337
        %v409 = vunpack.c.l.b16 %v338
        %v410 = vunpack.c.l.b16 %v339
        %v411 = vunpack.c.l.b16 %v340
        %v412 = vunpack.c.l.b16 %v341
        %v413 = vunpack.c.l.b16 %v342
        %v414 = vunpack.c.l.b16 %v343
        %v415 = vunpack.c.l.b16 %v344
        %v416 = vunpack.c.l.b16 %v345
        %v417 = vunpack.c.l.b16 %v346
        %v418 = vunpack.c.l.b16 %v347
        %v419 = vunpack.c.l.b16 %v348
        %v420 = vunpack.c.l.b16 %v349
        %v421 = vunpack.c.l.b16 %v350
        %v422 = vunpack.c.l.b16 %v351
        %v423 = vunpack.c.l.b16 %v352
        %v424 = vunpack.c.l.b16 %v353
        %v425 = vunpack.c.l.b16 %v354
        %v426 = vunpack.c.l.b16 %v355
        %v427 = vpack.c.b16 %v396, %v395
        %v428 = vpack.c.b16 %v398, %v397
        %v429 = vpack.c.b16 %v400, %v399
        %v430 = vpack.c.b16 %v402, %v401
        %v431 = vpack.c.b16 %v404, %v403
        %v432 = vpack.c.b16 %v406, %v405
        %v433 = vpack.c.b16 %v408, %v407
        %v434 = vpack.c.b16 %v410, %v409
        %v435 = vpack.c.b16 %v412, %v411
        %v436 = vpack.c.b16 %v414, %v413
        %v437 = vpack.c.b16 %v416, %v415
        %v438 = vpack.c.b16 %v418, %v417
        %v439 = vpack.c.b16 %v420, %v419
        %v440 = vpack.c.b16 %v422, %v421
        %v441 = vpack.c.b16 %v424, %v423
        %v442 = vpack.c.b16 %v426, %v425
        %459 = vmatprep.subr.bf16.mxu0 0
        %460 = vmatpush1.bf16.msra.mxu0 %v427
        %461 = vmatprep.subr.bf16.mxu0 0
        %462 = vmatpush1.bf16.msra.mxu0 %v428
        %463 = vmatprep.subr.bf16.mxu0 0
        %464 = vmatpush1.bf16.msra.mxu0 %v429
        %465 = vmatprep.subr.bf16.mxu0 0
        %466 = vmatpush1.bf16.msra.mxu0 %v430
        %467 = vmatprep.subr.bf16.mxu0 0
        %468 = vmatpush1.bf16.msra.mxu0 %v431
        %469 = vmatprep.subr.bf16.mxu0 0
        %470 = vmatpush1.bf16.msra.mxu0 %v432
        %471 = vmatprep.subr.bf16.mxu0 0
        %472 = vmatpush1.bf16.msra.mxu0 %v433
        %473 = vmatprep.subr.bf16.mxu0 0
        %474 = vmatpush1.bf16.msra.mxu0 %v434
        %475 = vmatprep.subr.bf16.mxu0 0
        %476 = vmatpush1.bf16.msra.mxu0 %v435
        %477 = vmatprep.subr.bf16.mxu0 0
        %478 = vmatpush1.bf16.msra.mxu0 %v436
        %479 = vmatprep.subr.bf16.mxu0 0
        %480 = vmatpush1.bf16.msra.mxu0 %v437
        %481 = vmatprep.subr.bf16.mxu0 0
        %482 = vmatpush1.bf16.msra.mxu0 %v438
        %483 = vmatprep.subr.bf16.mxu0 0
        %484 = vmatpush1.bf16.msra.mxu0 %v439
        %485 = vmatprep.subr.bf16.mxu0 0
        %486 = vmatpush1.bf16.msra.mxu0 %v440
        %487 = vmatprep.subr.bf16.mxu0 0
        %488 = vmatpush1.bf16.msra.mxu0 %v441
        %489 = vmatprep.subr.bf16.mxu0 0
        %490 = vmatpush1.bf16.msra.mxu0 %v442
        %491 = vmatprep.mubr.bf16.mxu0 %v309
        %492 = vmatmul.mubr.bf16.gmra.mrb[0].mxu0 %v308
        %v493 = vpop.f32.mrb[0].mxu0
        %v494 = vadd.f32 %v361, %v493
        %v495 = vpop.f32.mrb[0].mxu0
        %v496 = vpop.f32.mrb[0].mxu0
        %v497 = vadd.f32 %v361, %v496
        %v498 = vpop.f32.mrb[0].mxu0
        %499 = vmatprep.mubr.bf16.mxu0 %v311
        %500 = vmatmul.mubr.bf16.gmra.mrb[0].mxu0 %v310
        %v501 = vpop.f32.mrb[0].mxu0
        %v502 = vadd.f32 %v361, %v501
        %v503 = vpop.f32.mrb[0].mxu0
        %v504 = vpop.f32.mrb[0].mxu0
        %v505 = vadd.f32 %v361, %v504
        %v506 = vpop.f32.mrb[0].mxu0
        %507 = vmatprep.mubr.bf16.mxu0 %v313
        %508 = vmatmul.mubr.bf16.gmra.mrb[0].mxu0 %v312
        %v509 = vpop.f32.mrb[0].mxu0
        %v510 = vadd.f32 %v361, %v509
        %v511 = vpop.f32.mrb[0].mxu0
        %v512 = vpop.f32.mrb[0].mxu0
        %v513 = vadd.f32 %v361, %v512
        %v514 = vpop.f32.mrb[0].mxu0
        %515 = vmatprep.mubr.bf16.mxu0 %v315
        %516 = vmatmul.mubr.bf16.gmra.mrb[0].mxu0 %v314
        %v517 = vpop.f32.mrb[0].mxu0
        %v518 = vadd.f32 %v361, %v517
        %v519 = vpop.f32.mrb[0].mxu0
        %v520 = vpop.f32.mrb[0].mxu0
        %v521 = vadd.f32 %v361, %v520
        %v522 = vpop.f32.mrb[0].mxu0
        %523 = vmatprep.mubr.bf16.mxu0 %v317
        %524 = vmatmul.mubr.bf16.gmra.mrb[0].mxu0 %v316
        %v525 = vpop.f32.mrb[0].mxu0
        %v526 = vadd.f32 %v361, %v525
        %v527 = vpop.f32.mrb[0].mxu0
        %v528 = vpop.f32.mrb[0].mxu0
        %v529 = vadd.f32 %v361, %v528
        %v530 = vpop.f32.mrb[0].mxu0
        %531 = vmatprep.mubr.bf16.mxu0 %v319
        %532 = vmatmul.mubr.bf16.gmra.mrb[0].mxu0 %v318
        %v533 = vpop.f32.mrb[0].mxu0
        %v534 = vadd.f32 %v361, %v533
        %v535 = vpop.f32.mrb[0].mxu0
        %v536 = vpop.f32.mrb[0].mxu0
        %v537 = vadd.f32 %v361, %v536
        %v538 = vpop.f32.mrb[0].mxu0
        %539 = vmatprep.mubr.bf16.mxu0 %v321
        %540 = vmatmul.mubr.bf16.gmra.mrb[0].mxu0 %v320
        %v541 = vpop.f32.mrb[0].mxu0
        %v542 = vadd.f32 %v361, %v541
        %v543 = vpop.f32.mrb[0].mxu0
        %v544 = vpop.f32.mrb[0].mxu0
        %v545 = vadd.f32 %v361, %v544
        %v546 = vpop.f32.mrb[0].mxu0
        %547 = vmatprep.mubr.bf16.mxu0 %v323
        %548 = vmatmul.mubr.bf16.gmra.mrb[0].mxu0 %v322
        %v549 = vpop.f32.mrb[0].mxu0
        %v550 = vadd.f32 %v361, %v549
        %v551 = vpop.f32.mrb[0].mxu0
        %v552 = vpop.f32.mrb[0].mxu0
        %v553 = vadd.f32 %v361, %v552
        %v554 = vpop.f32.mrb[0].mxu0
        %555 = vdwg.mxu0
        %v556 = vtanh.pop %v494
        %v557 = vtanh.pop %v497
        %v558 = vtanh.pop %v502
        %v559 = vtanh.pop %v505
        %v560 = vtanh.pop %v510
        %v561 = vtanh.pop %v513
        %v562 = vtanh.pop %v518
        %v563 = vtanh.pop %v521
        %v564 = vtanh.pop %v526
        %v565 = vtanh.pop %v529
        %v566 = vtanh.pop %v534
        %v567 = vtanh.pop %v537
        %v568 = vtanh.pop %v542
        %v569 = vtanh.pop %v545
        %v570 = vtanh.pop %v550
        %v571 = vtanh.pop %v553
        %v572 = vpack.c.bf16 %v557, %v556
        %v573 = vpack.c.bf16 %v559, %v558
        %v574 = vpack.c.bf16 %v561, %v560
        %v575 = vpack.c.bf16 %v563, %v562
        %v576 = vpack.c.bf16 %v565, %v564
        %v577 = vpack.c.bf16 %v567, %v566
        %v578 = vpack.c.bf16 %v569, %v568
        %v579 = vpack.c.bf16 %v571, %v570
        %v580 = vld [vmem:[%s3] sm:$0xf]
        %v581 = vld [vmem:[%s3 + $0x4] sm:$0xf]
        %v582 = vld [vmem:[%s3 + $0x8] sm:$0xf]
        %v583 = vld [vmem:[%s3 + $0xc] sm:$0xf]
        %v584 = vld [vmem:[%s3 + $0x10] sm:$0xf]
        %v585 = vld [vmem:[%s3 + $0x14] sm:$0xf]
        %v586 = vld [vmem:[%s3 + $0x18] sm:$0xf]
        %v587 = vld [vmem:[%s3 + $0x1c] sm:$0xf]
        %v588 = vld [vmem:[%s3 + $0x20] sm:$0xf]
        %v589 = vld [vmem:[%s3 + $0x24] sm:$0xf]
        %v590 = vld [vmem:[%s3 + $0x28] sm:$0xf]
        %v591 = vld [vmem:[%s3 + $0x2c] sm:$0xf]
        %v592 = vld [vmem:[%s3 + $0x30] sm:$0xf]
        %v593 = vld [vmem:[%s3 + $0x34] sm:$0xf]
        %v594 = vld [vmem:[%s3 + $0x38] sm:$0xf]
        %v595 = vld [vmem:[%s3 + $0x3c] sm:$0xf]
        %v596 = vld [vmem:[#allocation2] sm:$0x1]
        %v598 = vlaneseq
        %v599 = vshrl.u32 %v598, 7
        %v600 = vsub.s32 0, %v599
        %v601 = vrot.slane %v596, %v600
        %v619 = vunpack.c.l.b16 %v580
        %v620 = vunpack.c.l.b16 %v581
        %v621 = vunpack.c.l.b16 %v582
        %v622 = vunpack.c.l.b16 %v583
        %v623 = vunpack.c.l.b16 %v584
        %v624 = vunpack.c.l.b16 %v585
        %v625 = vunpack.c.l.b16 %v586
        %v626 = vunpack.c.l.b16 %v587
        %v627 = vunpack.c.l.b16 %v588
        %v628 = vunpack.c.l.b16 %v589
        %v629 = vunpack.c.l.b16 %v590
        %v630 = vunpack.c.l.b16 %v591
        %v631 = vunpack.c.l.b16 %v592
        %v632 = vunpack.c.l.b16 %v593
        %v633 = vunpack.c.l.b16 %v594
        %v634 = vunpack.c.l.b16 %v595
        %v635 = vpack.c.b16 %v620, %v619
        %v636 = vpack.c.b16 %v622, %v621
        %v637 = vpack.c.b16 %v624, %v623
        %v638 = vpack.c.b16 %v626, %v625
        %v639 = vpack.c.b16 %v628, %v627
        %v640 = vpack.c.b16 %v630, %v629
        %v641 = vpack.c.b16 %v632, %v631
        %v642 = vpack.c.b16 %v634, %v633
        %651 = vmatprep.subr.bf16.mxu0 0
        %652 = vmatpush1.bf16.msra.mxu0 %v635
        %653 = vmatprep.subr.bf16.mxu0 0
        %654 = vmatpush1.bf16.msra.mxu0 %v636
        %655 = vmatprep.subr.bf16.mxu0 0
        %656 = vmatpush1.bf16.msra.mxu0 %v637
        %657 = vmatprep.subr.bf16.mxu0 0
        %658 = vmatpush1.bf16.msra.mxu0 %v638
        %659 = vmatprep.subr.bf16.mxu0 0
        %660 = vmatpush1.bf16.msra.mxu0 %v639
        %661 = vmatprep.subr.bf16.mxu0 0
        %662 = vmatpush1.bf16.msra.mxu0 %v640
        %663 = vmatprep.subr.bf16.mxu0 0
        %664 = vmatpush1.bf16.msra.mxu0 %v641
        %665 = vmatprep.subr.bf16.mxu0 0
        %666 = vmatpush1.bf16.msra.mxu0 %v642
        %667 = vmatprep.subr.bf16.mxu0 0
        %668 = vmatpush1.bf16.msra.mxu0 0
        %669 = vmatprep.subr.bf16.mxu0 0
        %670 = vmatpush1.bf16.msra.mxu0 0
        %671 = vmatprep.subr.bf16.mxu0 0
        %672 = vmatpush1.bf16.msra.mxu0 0
        %673 = vmatprep.subr.bf16.mxu0 0
        %674 = vmatpush1.bf16.msra.mxu0 0
        %675 = vmatprep.subr.bf16.mxu0 0
        %676 = vmatpush1.bf16.msra.mxu0 0
        %677 = vmatprep.subr.bf16.mxu0 0
        %678 = vmatpush1.bf16.msra.mxu0 0
        %679 = vmatprep.subr.bf16.mxu0 0
        %680 = vmatpush1.bf16.msra.mxu0 0
        %681 = vmatprep.subr.bf16.mxu0 0
        %682 = vmatpush1.bf16.msra.mxu0 0
        %683 = vmatprep.mubr.bf16.mxu0 0
        %684 = vmatmul.mubr.bf16.gmra.mrb[0].mxu0 %v572
        %v685 = vpop.f32.mrb[0].mxu0
        %v686 = vadd.f32 %v601, %v685
        %v687 = vpop.f32.mrb[0].mxu0
        %v688 = vpop.f32.mrb[0].mxu0
        %v689 = vadd.f32 %v601, %v688
        %v690 = vpop.f32.mrb[0].mxu0
        %691 = vmatprep.mubr.bf16.mxu0 0
        %692 = vmatmul.mubr.bf16.gmra.mrb[0].mxu0 %v573
        %v693 = vpop.f32.mrb[0].mxu0
        %v694 = vadd.f32 %v601, %v693
        %v695 = vpop.f32.mrb[0].mxu0
        %v696 = vpop.f32.mrb[0].mxu0
        %v697 = vadd.f32 %v601, %v696
        %v698 = vpop.f32.mrb[0].mxu0
        %699 = vmatprep.mubr.bf16.mxu0 0
        %700 = vmatmul.mubr.bf16.gmra.mrb[0].mxu0 %v574
        %v701 = vpop.f32.mrb[0].mxu0
        %v702 = vadd.f32 %v601, %v701
        %v703 = vpop.f32.mrb[0].mxu0
        %v704 = vpop.f32.mrb[0].mxu0
        %v705 = vadd.f32 %v601, %v704
        %v706 = vpop.f32.mrb[0].mxu0
        %707 = vmatprep.mubr.bf16.mxu0 0
        %708 = vmatmul.mubr.bf16.gmra.mrb[0].mxu0 %v575
        %v709 = vpop.f32.mrb[0].mxu0
        %v710 = vadd.f32 %v601, %v709
        %v711 = vpop.f32.mrb[0].mxu0
        %v712 = vpop.f32.mrb[0].mxu0
        %v713 = vadd.f32 %v601, %v712
        %v714 = vpop.f32.mrb[0].mxu0
        %715 = vmatprep.mubr.bf16.mxu0 0
        %716 = vmatmul.mubr.bf16.gmra.mrb[0].mxu0 %v576
        %v717 = vpop.f32.mrb[0].mxu0
        %v718 = vadd.f32 %v601, %v717
        %v719 = vpop.f32.mrb[0].mxu0
        %v720 = vpop.f32.mrb[0].mxu0
        %v721 = vadd.f32 %v601, %v720
        %v722 = vpop.f32.mrb[0].mxu0
        %723 = vmatprep.mubr.bf16.mxu0 0
        %724 = vmatmul.mubr.bf16.gmra.mrb[0].mxu0 %v577
        %v725 = vpop.f32.mrb[0].mxu0
        %v726 = vadd.f32 %v601, %v725
        %v727 = vpop.f32.mrb[0].mxu0
        %v728 = vpop.f32.mrb[0].mxu0
        %v729 = vadd.f32 %v601, %v728
        %v730 = vpop.f32.mrb[0].mxu0
        %731 = vmatprep.mubr.bf16.mxu0 0
        %732 = vmatmul.mubr.bf16.gmra.mrb[0].mxu0 %v578
        %v733 = vpop.f32.mrb[0].mxu0
        %v734 = vadd.f32 %v601, %v733
        %v735 = vpop.f32.mrb[0].mxu0
        %v736 = vpop.f32.mrb[0].mxu0
        %v737 = vadd.f32 %v601, %v736
        %v738 = vpop.f32.mrb[0].mxu0
        %739 = vmatprep.mubr.bf16.mxu0 0
        %740 = vmatmul.mubr.bf16.gmra.mrb[0].mxu0 %v579
        %v741 = vpop.f32.mrb[0].mxu0
        %v742 = vadd.f32 %v601, %v741
        %v743 = vpop.f32.mrb[0].mxu0
        %v744 = vpop.f32.mrb[0].mxu0
        %v745 = vadd.f32 %v601, %v744
        %v746 = vpop.f32.mrb[0].mxu0
        %747 = vdwg.mxu0
        %vm748 = vcmask 7168
        %749 = vst.msk [vmem:[%s263] sm:$0xff] %vm748, %v686
        %750 = vst.msk [vmem:[%s263 + $0x8] sm:$0xff] %vm748, %v689
        %751 = vst.msk [vmem:[%s263 + $0x10] sm:$0xff] %vm748, %v694
        %752 = vst.msk [vmem:[%s263 + $0x18] sm:$0xff] %vm748, %v697
        %753 = vst.msk [vmem:[%s263 + $0x20] sm:$0xff] %vm748, %v702
        %754 = vst.msk [vmem:[%s263 + $0x28] sm:$0xff] %vm748, %v705
        %755 = vst.msk [vmem:[%s263 + $0x30] sm:$0xff] %vm748, %v710
        %756 = vst.msk [vmem:[%s263 + $0x38] sm:$0xff] %vm748, %v713
        %757 = vst.msk [vmem:[%s263 + $0x40] sm:$0xff] %vm748, %v718
        %758 = vst.msk [vmem:[%s263 + $0x48] sm:$0xff] %vm748, %v721
        %759 = vst.msk [vmem:[%s263 + $0x50] sm:$0xff] %vm748, %v726
        %760 = vst.msk [vmem:[%s263 + $0x58] sm:$0xff] %vm748, %v729
        %761 = vst.msk [vmem:[%s263 + $0x60] sm:$0xff] %vm748, %v734
        %762 = vst.msk [vmem:[%s263 + $0x68] sm:$0xff] %vm748, %v737
        %763 = vst.msk [vmem:[%s263 + $0x70] sm:$0xff] %vm748, %v742
        %764 = vst.msk [vmem:[%s263 + $0x78] sm:$0xff] %vm748, %v745
        %s765 = sand.u32 %s140, 1
        %s766 = sand.u32 %s140, 1
        %s767 = smul.addr %s766, 128
        %s768 = scalar_lea.vmem [#allocation7], %s767
        // Predicated region
        $region49: #{tpu_custom_call.1} parent=39 // pred_check
          %p769 = pneg %p150
        $region50: #{tpu_custom_call.1} parent=39 // pred_check_branch
          %771 = sbr.rel (%p769) target = $region52
        $region51: #{tpu_custom_call.1} parent=39 // pred_region
          %s772 = smul.u32 16, %s22
          %s773 = ssub.s32 25, %s772
          %p774 = scmp.lt.s32.totalorder %s773, 16
          %s775 = scalar_select %p774, %s773, 16
          %s776 = smul.u32 128, %s775
          %p777 = scmp.ne.s32.totalorder 0, %s776
          %s778 = smul.addr %s772, 8
          %s779 = scalar_lea.vmem %s5, %s778
          // Predicated region
          $region53: #{tpu_custom_call.1} parent=51 // pred_check
            %p780 = pneg %p777
          $region54: #{tpu_custom_call.1} parent=51 // pred_check_branch
            %782 = sbr.rel (%p780) target = $region56
          $region55: #{tpu_custom_call.1} parent=51 // pred_region
            // Predicated region
            $region57: #{tpu_custom_call.1} parent=55 // pred_check
              _
            $region58: #{tpu_custom_call.1} parent=55 // pred_check_branch
              %784 = sbr.rel (0) target = $region60
            $region59: #{tpu_custom_call.1} parent=55 // pred_region
              // Predicated region
              $region79: #{tpu_custom_call.1} parent=59 // pred_check
                _
              $region80: #{tpu_custom_call.1} parent=59 // pred_check_branch
                %863 = sbr.rel (0) target = $region82
              $region81: #{tpu_custom_call.1} parent=59 // pred_region
                %s864 = sshrl.u32 %s775, 4
                // While loop
                $region83: #{tpu_custom_call.1} parent=81 // loop_pre_header
                  _
                $region84: #{tpu_custom_call.1} parent=81 // loop_header
                  %s866 = sphi 0, %s868
                  %p867 = scmp.ge.s32.totalorder %s866, %s864
                  %s871 = sphi 0, %s908
                  %s872 = sphi %s768, %s911
                  %s873 = sphi %s779, %s912
                $region85: #{tpu_custom_call.1} parent=81 // loop_header_branch
                  %870 = sbr.rel (%p867) target = $region89
                $region86: #{tpu_custom_call.1} parent=81 // loop_body
                  %v874 = vld [vmem:[%s872] sm:$0xff]
                  %875 = vst [vmem:[%s873] sm:$0xff] %v874
                  %v876 = vld [vmem:[%s872 + $0x8] sm:$0xff]
                  %877 = vst [vmem:[%s873 + $0x8] sm:$0xff] %v876
                  %v878 = vld [vmem:[%s872 + $0x10] sm:$0xff]
                  %879 = vst [vmem:[%s873 + $0x10] sm:$0xff] %v878
                  %v880 = vld [vmem:[%s872 + $0x18] sm:$0xff]
                  %881 = vst [vmem:[%s873 + $0x18] sm:$0xff] %v880
                  %v882 = vld [vmem:[%s872 + $0x20] sm:$0xff]
                  %883 = vst [vmem:[%s873 + $0x20] sm:$0xff] %v882
                  %v884 = vld [vmem:[%s872 + $0x28] sm:$0xff]
                  %885 = vst [vmem:[%s873 + $0x28] sm:$0xff] %v884
                  %v886 = vld [vmem:[%s872 + $0x30] sm:$0xff]
                  %887 = vst [vmem:[%s873 + $0x30] sm:$0xff] %v886
                  %v888 = vld [vmem:[%s872 + $0x38] sm:$0xff]
                  %889 = vst [vmem:[%s873 + $0x38] sm:$0xff] %v888
                  %v890 = vld [vmem:[%s872 + $0x40] sm:$0xff]
                  %891 = vst [vmem:[%s873 + $0x40] sm:$0xff] %v890
                  %v892 = vld [vmem:[%s872 + $0x48] sm:$0xff]
                  %893 = vst [vmem:[%s873 + $0x48] sm:$0xff] %v892
                  %v894 = vld [vmem:[%s872 + $0x50] sm:$0xff]
                  %895 = vst [vmem:[%s873 + $0x50] sm:$0xff] %v894
                  %v896 = vld [vmem:[%s872 + $0x58] sm:$0xff]
                  %897 = vst [vmem:[%s873 + $0x58] sm:$0xff] %v896
                  %v898 = vld [vmem:[%s872 + $0x60] sm:$0xff]
                  %899 = vst [vmem:[%s873 + $0x60] sm:$0xff] %v898
                  %v900 = vld [vmem:[%s872 + $0x68] sm:$0xff]
                  %901 = vst [vmem:[%s873 + $0x68] sm:$0xff] %v900
                  %v902 = vld [vmem:[%s872 + $0x70] sm:$0xff]
                  %903 = vst [vmem:[%s873 + $0x70] sm:$0xff] %v902
                  %v904 = vld [vmem:[%s872 + $0x78] sm:$0xff]
                  %905 = vst [vmem:[%s873 + $0x78] sm:$0xff] %v904
                  %s906 = sadd.s32 1, %s871
                  %p907 = scmp.ge.s32.totalorder %s906, %s864
                  %s908 = scalar_select %p907, 0, %s906
                  %s909 = smul.u32 %s908, 128
                  %s910 = smul.u32 %s908, 128
                  %s911 = scalar_lea.vmem %s768, %s909 [#allocation7]
                  %s912 = scalar_lea.vmem %s779, %s910
                $region87: #{tpu_custom_call.1} parent=81 // loop_footer
                  %s868 = sadd.s32 %s866, 1
                $region88: #{tpu_custom_call.1} parent=81 // loop_footer_branch
                  %865 = sbr.rel target = $region84
                $region89: #{tpu_custom_call.1} parent=81 // loop_exit
                  _
                %s913 = sshrl.u32 %s775, 4
                %s914 = sand.u32 %s775, 15
                %s915 = smul.u32 %s913, 16
                %s916 = smul.u32 8, %s915
                %s917 = scalar_lea.vmem %s768, %s916 [#allocation7]
                %s918 = smul.u32 8, %s915
                %s919 = scalar_lea.vmem %s779, %s918
                // While loop
                $region90: #{tpu_custom_call.1} parent=81 // loop_pre_header
                  _
                $region91: #{tpu_custom_call.1} parent=81 // loop_header
                  %s921 = sphi 0, %s923
                  %p922 = scmp.ge.s32.totalorder %s921, %s914
                  %s926 = sphi 0, %s933
                  %s927 = sphi %s917, %s936
                  %s928 = sphi %s919, %s937
                $region92: #{tpu_custom_call.1} parent=81 // loop_header_branch
                  %925 = sbr.rel (%p922) target = $region96
                $region93: #{tpu_custom_call.1} parent=81 // loop_body
                  %v929 = vld [vmem:[%s927] sm:$0xff]
                  %930 = vst [vmem:[%s928] sm:$0xff] %v929
                  %s931 = sadd.s32 1, %s926
                  %p932 = scmp.ge.s32.totalorder %s931, %s914
                  %s933 = scalar_select %p932, 0, %s931
                  %s934 = smul.u32 %s933, 8
                  %s935 = smul.u32 %s933, 8
                  %s936 = scalar_lea.vmem %s917, %s934 [#allocation7]
                  %s937 = scalar_lea.vmem %s919, %s935
                $region94: #{tpu_custom_call.1} parent=81 // loop_footer
                  %s923 = sadd.s32 %s921, 1
                $region95: #{tpu_custom_call.1} parent=81 // loop_footer_branch
                  %920 = sbr.rel target = $region91
                $region96: #{tpu_custom_call.1} parent=81 // loop_exit
                  _
              $region82: #{tpu_custom_call.1} parent=59 // pred_fallthru
                _
              // Predicated region
              $region97: #{tpu_custom_call.1} parent=59 // pred_check
                _
              $region98: #{tpu_custom_call.1} parent=59 // pred_check_branch
                %939 = sbr.rel target = $region100
              $region99: #{tpu_custom_call.1} parent=59 // pred_region
                _
              $region100: #{tpu_custom_call.1} parent=59 // pred_fallthru
                _
            $region60: #{tpu_custom_call.1} parent=55 // pred_fallthru
              _
            // Predicated region
            $region61: #{tpu_custom_call.1} parent=55 // pred_check
              _
            $region62: #{tpu_custom_call.1} parent=55 // pred_check_branch
              %786 = sbr.rel target = $region64
            $region63: #{tpu_custom_call.1} parent=55 // pred_region
              %s788 = sshrl.u32 %s775, 4
              // While loop
              $region65: #{tpu_custom_call.1} parent=63 // loop_pre_header
                _
              $region66: #{tpu_custom_call.1} parent=63 // loop_header
                %s790 = sphi 0, %s792
                %p791 = scmp.ge.s32.totalorder %s790, %s788
                %s795 = sphi 0, %s832
                %s796 = sphi %s768, %s835
                %s797 = sphi %s779, %s836
              $region67: #{tpu_custom_call.1} parent=63 // loop_header_branch
                %794 = sbr.rel (%p791) target = $region71
              $region68: #{tpu_custom_call.1} parent=63 // loop_body
                %v798 = vld [vmem:[%s796] sm:$0xff]
                %799 = vst [vmem:[%s797] sm:$0xff] %v798
                %v800 = vld [vmem:[%s796 + $0x8] sm:$0xff]
                %801 = vst [vmem:[%s797 + $0x8] sm:$0xff] %v800
                %v802 = vld [vmem:[%s796 + $0x10] sm:$0xff]
                %803 = vst [vmem:[%s797 + $0x10] sm:$0xff] %v802
                %v804 = vld [vmem:[%s796 + $0x18] sm:$0xff]
                %805 = vst [vmem:[%s797 + $0x18] sm:$0xff] %v804
                %v806 = vld [vmem:[%s796 + $0x20] sm:$0xff]
                %807 = vst [vmem:[%s797 + $0x20] sm:$0xff] %v806
                %v808 = vld [vmem:[%s796 + $0x28] sm:$0xff]
                %809 = vst [vmem:[%s797 + $0x28] sm:$0xff] %v808
                %v810 = vld [vmem:[%s796 + $0x30] sm:$0xff]
                %811 = vst [vmem:[%s797 + $0x30] sm:$0xff] %v810
                %v812 = vld [vmem:[%s796 + $0x38] sm:$0xff]
                %813 = vst [vmem:[%s797 + $0x38] sm:$0xff] %v812
                %v814 = vld [vmem:[%s796 + $0x40] sm:$0xff]
                %815 = vst [vmem:[%s797 + $0x40] sm:$0xff] %v814
                %v816 = vld [vmem:[%s796 + $0x48] sm:$0xff]
                %817 = vst [vmem:[%s797 + $0x48] sm:$0xff] %v816
                %v818 = vld [vmem:[%s796 + $0x50] sm:$0xff]
                %819 = vst [vmem:[%s797 + $0x50] sm:$0xff] %v818
                %v820 = vld [vmem:[%s796 + $0x58] sm:$0xff]
                %821 = vst [vmem:[%s797 + $0x58] sm:$0xff] %v820
                %v822 = vld [vmem:[%s796 + $0x60] sm:$0xff]
                %823 = vst [vmem:[%s797 + $0x60] sm:$0xff] %v822
                %v824 = vld [vmem:[%s796 + $0x68] sm:$0xff]
                %825 = vst [vmem:[%s797 + $0x68] sm:$0xff] %v824
                %v826 = vld [vmem:[%s796 + $0x70] sm:$0xff]
                %827 = vst [vmem:[%s797 + $0x70] sm:$0xff] %v826
                %v828 = vld [vmem:[%s796 + $0x78] sm:$0xff]
                %829 = vst [vmem:[%s797 + $0x78] sm:$0xff] %v828
                %s830 = sadd.s32 1, %s795
                %p831 = scmp.ge.s32.totalorder %s830, %s788
                %s832 = scalar_select %p831, 0, %s830
                %s833 = smul.u32 %s832, 128
                %s834 = smul.u32 %s832, 128
                %s835 = scalar_lea.vmem %s768, %s833 [#allocation7]
                %s836 = scalar_lea.vmem %s779, %s834
              $region69: #{tpu_custom_call.1} parent=63 // loop_footer
                %s792 = sadd.s32 %s790, 1
              $region70: #{tpu_custom_call.1} parent=63 // loop_footer_branch
                %789 = sbr.rel target = $region66
              $region71: #{tpu_custom_call.1} parent=63 // loop_exit
                _
              %s837 = sshrl.u32 %s775, 4
              %s838 = sand.u32 %s775, 15
              %s839 = smul.u32 %s837, 16
              %s840 = smul.u32 8, %s839
              %s841 = scalar_lea.vmem %s768, %s840 [#allocation7]
              %s842 = smul.u32 8, %s839
              %s843 = scalar_lea.vmem %s779, %s842
              // While loop
              $region72: #{tpu_custom_call.1} parent=63 // loop_pre_header
                _
              $region73: #{tpu_custom_call.1} parent=63 // loop_header
                %s845 = sphi 0, %s847
                %p846 = scmp.ge.s32.totalorder %s845, %s838
                %s850 = sphi 0, %s857
                %s851 = sphi %s841, %s860
                %s852 = sphi %s843, %s861
              $region74: #{tpu_custom_call.1} parent=63 // loop_header_branch
                %849 = sbr.rel (%p846) target = $region78
              $region75: #{tpu_custom_call.1} parent=63 // loop_body
                %v853 = vld [vmem:[%s851] sm:$0xff]
                %854 = vst [vmem:[%s852] sm:$0xff] %v853
                %s855 = sadd.s32 1, %s850
                %p856 = scmp.ge.s32.totalorder %s855, %s838
                %s857 = scalar_select %p856, 0, %s855
                %s858 = smul.u32 %s857, 8
                %s859 = smul.u32 %s857, 8
                %s860 = scalar_lea.vmem %s841, %s858 [#allocation7]
                %s861 = scalar_lea.vmem %s843, %s859
              $region76: #{tpu_custom_call.1} parent=63 // loop_footer
                %s847 = sadd.s32 %s845, 1
              $region77: #{tpu_custom_call.1} parent=63 // loop_footer_branch
                %844 = sbr.rel target = $region73
              $region78: #{tpu_custom_call.1} parent=63 // loop_exit
                _
            $region64: #{tpu_custom_call.1} parent=55 // pred_fallthru
              _
          $region56: #{tpu_custom_call.1} parent=51 // pred_fallthru
            _
          %940 = vnop
        $region52: #{tpu_custom_call.1} parent=39 // pred_fallthru
          _
      $region40: #{tpu_custom_call.1} parent=5 // pred_fallthru
        _
      %p941 = scmp.le.s32.totalorder 2, %s17
      // Predicated region
      $region101: #{tpu_custom_call.1} parent=5 // pred_check
        %p942 = pneg %p941
      $region102: #{tpu_custom_call.1} parent=5 // pred_check_branch
        %944 = sbr.rel (%p942) target = $region104
      $region103: #{tpu_custom_call.1} parent=5 // pred_region
        %s945 = ssub.s32 %s17, 2
        // Predicated region
        $region105: #{tpu_custom_call.1} parent=103 // pred_check
          %p946 = pneg %p156
        $region106: #{tpu_custom_call.1} parent=103 // pred_check_branch
          %948 = sbr.rel (%p946) target = $region108
        $region107: #{tpu_custom_call.1} parent=103 // pred_region
          %s949 = sand.u32 %s141, 1
          %s950 = sand.u32 %s141, 1
          %s951 = smul.addr %s950, 128
          %s952 = scalar_lea.vmem [#allocation7], %s951
        $region108: #{tpu_custom_call.1} parent=103 // pred_fallthru
          _
      $region104: #{tpu_custom_call.1} parent=5 // pred_fallthru
        _
    $region6: #{tpu_custom_call.1} parent=1 // loop_footer
      %s21 = sadd.s32 1, %s17
    $region7: #{tpu_custom_call.1} parent=1 // loop_footer_branch
      %16 = sbr.rel target = $region3
    $region8: #{tpu_custom_call.1} parent=1 // loop_exit
      _
    %953 = vsyncpa [#allocation4], 1
    %s954 = scalar_lea.sflag [#allocation4], 1
    %955 = vsyncpa %s954, 1
    %956 = vsyncpa [#allocation6], 1

</llo_original>
